<compile_context>
chip_gen: v7x
topology: tpu7x:2x2x1
jax: 0.10.0
libtpu: 0.0.40
codegen_flags: <defaults>
</compile_context>

<pallas_src>
import functools

import jax
import jax.numpy as jnp
from jax.experimental import pallas as pl
from jax.experimental.pallas import tpu as pltpu

_HALF_LOG_2PI = 0.9189385332046727   # 0.5 * log(2*pi)
_QSCALE = 2.0 ** -20                 # exact power of two; cancels exactly below


def _cdiv(a, b):
    return -(-a // b)


def _round_up(v, m):
    return ((v + m - 1) // m) * m


def _stirling(w):
    """lgamma(w) for w >= 8 via the Stirling series (abs. error < 3e-10)."""
    lw = jnp.log(w)
    r = pl.reciprocal(w, approx=True)      # EUP vrcp; tail <= ~0.01 so approx is safe
    r2 = r * r
    tail = r * (1.0 / 12.0 - r2 * (1.0 / 360.0 - r2 * (1.0 / 1260.0)))
    return (w - 0.5) * lw - w + _HALF_LOG_2PI + tail


def _quartics(z):
    """(z(z+1)(z+2)(z+3), (z+4)..(z+7)), each pre-scaled by _QSCALE (exact pow2)."""
    p0 = (z * (z + 1.0)) * ((z + 2.0) * (z + 3.0)) * _QSCALE
    p1 = ((z + 4.0) * (z + 5.0)) * ((z + 6.0) * (z + 7.0)) * _QSCALE
    return p0, p1


def _row_reduce_8(val):
    """(tm, G) -> (8, G) by summing aligned 8-row groups (pure VALU adds)."""
    tm = val.shape[0]
    red = val[0:8, :]
    for r in range(1, tm // 8):
        red = red + val[8 * r:8 * (r + 1), :]
    return red


def _zinb_nb_kernel(mean_ref, disp_ref, pi_ref, x_ref, out_ref, *,
                    eps, n_rows, tm, n_tiles, needs_row_mask, needs_range_gate):
    p = pl.program_id(0)
    s = pl.program_id(1)
    steps = pl.num_programs(1)
    t = p * steps + s

    @pl.when(s == 0)
    def _():
        out_ref[...] = jnp.zeros_like(out_ref)

    def body():
        mean = mean_ref[...].astype(jnp.float32)
        disp = disp_ref[...].astype(jnp.float32)
        pi = pi_ref[...].astype(jnp.float32)
        x = x_ref[...].astype(jnp.float32)

        d = disp + eps
        x1 = x + 1.0
        xd = x + d

        # t1 = lgamma(d) + lgamma(x+1) - lgamma(x+d), via shift-by-8 Stirling.
        # The three shift terms are combined into two log-of-ratio terms
        # (2 logs + 2 divides instead of 6 logs).  The _QSCALE factors cancel
        # exactly (one extra numerator factor per ratio restores the balance).
        st = _stirling(d + 8.0) + _stirling(x1 + 8.0) - _stirling(xd + 8.0)
        pd0, pd1 = _quartics(d)
        px0, px1 = _quartics(x1)
        pxd0, pxd1 = _quartics(xd)
        shift = (jnp.log((pxd0 * _QSCALE) / (pd0 * px0)) +
                 jnp.log((pxd1 * _QSCALE) / (pd1 * px1)))
        t1 = st + shift

        # t2 = (disp+x)*log(1 + mean/(disp+eps)) + x*(log(disp+eps)-log(mean+eps))
        #    = (disp+x)*(log(mean+d) - log(d)) + x*(log(d) - log(mean+eps))
        ld = jnp.log(d)
        lm = jnp.log(mean + eps)
        ldm = jnp.log(mean + d)
        t2 = (disp + x) * (ldm - ld) + x * (ld - lm)

        val = t1 + t2 - jnp.log(1.0 - pi + eps)

        if needs_row_mask:
            rows = t * tm + jax.lax.broadcasted_iota(jnp.int32, val.shape, 0)
            val = jnp.where(rows < n_rows, val, 0.0)   # select -> padded garbage never propagates

        out_ref[0] += _row_reduce_8(val)

    if needs_range_gate:
        @pl.when(t < n_tiles)     # skip clamped out-of-range trailing steps entirely
        def _():
            body()
    else:
        body()


def _zinb_zero_kernel(mean_ref, disp_ref, pi_ref, out_ref, *,
                      eps, n_rows, tm, n_tiles, needs_row_mask, needs_range_gate):
    p = pl.program_id(0)
    s = pl.program_id(1)
    steps = pl.num_programs(1)
    t = p * steps + s

    @pl.when(s == 0)
    def _():
        out_ref[...] = jnp.zeros_like(out_ref)

    def body():
        mean = mean_ref[...].astype(jnp.float32)
        disp = disp_ref[...].astype(jnp.float32)
        pi = pi_ref[...].astype(jnp.float32)

        # torch.pow(disp / (disp + mean + eps), disp); the 1e-30 floor is a
        # *normal* f32 (TPU flushes denormals), so disp == 0 still yields
        # exp(0 * log(1e-30)) == 1 == pow(0, 0).  Exact divide kept: this
        # branch is HBM-bound on v5e/v6e.
        ratio = jnp.maximum(disp / (disp + mean + eps), 1e-30)
        zero_nb = jnp.exp(disp * jnp.log(ratio))
        val = -jnp.log(pi + (1.0 - pi) * zero_nb + eps)

        if needs_row_mask:
            rows = t * tm + jax.lax.broadcasted_iota(jnp.int32, val.shape, 0)
            val = jnp.where(rows < n_rows, val, 0.0)

        out_ref[0] += _row_reduce_8(val)

    if needs_range_gate:
        @pl.when(t < n_tiles)
        def _():
            body()
    else:
        body()


def _vmem_capacity_bytes():
    try:
        info = pltpu.get_tpu_info()
        cap = int(getattr(info, "vmem_capacity_bytes", 0) or 0)
        if cap > 0:
            return cap
    except Exception:
        pass
    return 64 * 1024 * 1024   # conservative default (v7x per-core VMEM)


def _num_tensorcores():
    """Best-effort TensorCore-per-chip count; defaults to 1 (v5e/v6e)."""
    try:
        info = pltpu.get_tpu_info()
        for attr in ("num_tensorcores", "tensorcores_per_chip", "num_tensor_cores"):
            v = getattr(info, attr, None)
            if v:
                return int(v)
    except Exception:
        pass
    return 1


def _pick_row_tile(n_rows, n_cols, n_streams, vmem_limit, sub):
    """Largest row tile (multiple of `sub`) fitting inputs + temporaries in VMEM."""
    budget = int(vmem_limit * 0.7)
    # double-buffered f32 input streams + ~12 materialized (tm, G) f32 temporaries
    bytes_per_row = (2 * n_streams + 12) * n_cols * 4
    tm = budget // max(bytes_per_row, 1)
    tm = min(tm, 512, _round_up(n_rows, sub))   # >=512 rows is already ~85% of roofline
    tm = (tm // sub) * sub
    return max(sub, tm)
    # TODO(synk): for extremely large G add a second grid axis over genes
    # instead of shrinking the row tile to its minimum.


def zinb_loss(mean, disp, pi, x=None, eps=1e-10, *, row_tile=None, num_parallel=None):
    """Pallas implementation of ZINBLoss.forward. Returns a scalar f32.

    bf16 inputs are accepted (the kernel upcasts to f32); recommended for the
    x is None branch on v5e/v6e where it is HBM-bound.
    """
    N, G = mean.shape
    inputs = (mean, disp, pi) if x is None else (mean, disp, pi, x)
    n_streams = len(inputs)

    # Sub-32-bit inputs pack 2 rows per sublane -> use 16-row tile granularity.
    sub = 16 if any(a.dtype.itemsize < 4 for a in inputs) else 8

    vmem_cap = _vmem_capacity_bytes()
    vmem_limit = max(32 * 1024 * 1024, min(int(vmem_cap * 0.85), 112 * 1024 * 1024))
    tm = row_tile if row_tile is not None else _pick_row_tile(
        N, G, n_streams, vmem_limit, sub)
    assert tm % sub == 0, "row tile must be a multiple of the sublane granularity"

    n_tiles = _cdiv(N, tm)
    if num_parallel is None:
        # 1 on single-TensorCore chips (v5e/v6e) -> no super-block overhead.
        # TODO(synk): on v7x consider pltpu.CORE_PARALLEL (or pl.core_map) if
        # plain "parallel" does not actually shard across the 2 TensorCores.
        num_parallel = min(_num_tensorcores(), 2)
    num_parallel = max(1, min(int(num_parallel), n_tiles))
    steps = _cdiv(n_tiles, num_parallel)

    needs_range_gate = (num_parallel * steps) != n_tiles
    needs_row_mask = (n_tiles * tm) != N

    def row_map(p, s):
        # Clamp so fully out-of-range trailing steps of the last super-block
        # just re-read the final block; their compute is skipped via pl.when.
        return (jnp.minimum(p * steps + s, n_tiles - 1), 0)

    tile_spec = pl.BlockSpec((tm, G), row_map)
    out_spec = pl.BlockSpec((1, 8, G), lambda p, s: (p, 0, 0))

    common = dict(eps=eps, n_rows=N, tm=tm, n_tiles=n_tiles,
                  needs_row_mask=needs_row_mask, needs_range_gate=needs_range_gate)
    kern = functools.partial(_zinb_zero_kernel if x is None else _zinb_nb_kernel,
                             **common)

    partials = pl.pallas_call(
        kern,
        out_shape=jax.ShapeDtypeStruct((num_parallel, 8, G), jnp.float32),
        grid_spec=pltpu.PrefetchScalarGridSpec(
            num_scalar_prefetch=0,
            grid=(num_parallel, steps),
            in_specs=[tile_spec] * n_streams,
            out_specs=out_spec),
        compiler_params=pltpu.CompilerParams(
            dimension_semantics=("parallel", "arbitrary"),
            vmem_limit_bytes=vmem_limit),
    )(*inputs)

    return jnp.sum(partials) / float(N * G)


def _zinb_loss_ref(mean, disp, pi, x=None, eps=1e-10):
    """Pure-JAX reference mirroring the PyTorch module."""
    if x is None:
        zero_nb = jnp.power(disp / (disp + mean + eps), disp)
        zero_case = -jnp.log(pi + (1.0 - pi) * zero_nb + eps)
        return jnp.mean(zero_case)
    t1 = jax.lax.lgamma(disp + eps) + jax.lax.lgamma(x + 1.0) - jax.lax.lgamma(x + disp + eps)
    t2 = (disp + x) * jnp.log(1.0 + mean / (disp + eps)) + \
         x * (jnp.log(disp + eps) - jnp.log(mean + eps))
    nb_case = t1 + t2 - jnp.log(1.0 - pi + eps)
    return jnp.mean(nb_case)


def _make_inputs(key, n, g):
    k_mean, k_disp, k_pi, k_x = jax.random.split(key, 4)
    mean = jax.nn.softplus(jax.random.normal(k_mean, (n, g), jnp.float32)) * 3.0
    disp = jax.nn.softplus(jax.random.normal(k_disp, (n, g), jnp.float32)) + 0.1
    pi = jax.nn.sigmoid(jax.random.normal(k_pi, (n, g), jnp.float32))
    x = jnp.floor(jax.random.uniform(k_x, (n, g), jnp.float32) * 10.0)
    return mean, disp, pi, x


if __name__ == "__main__":
    # ZINBLoss has no parameters (empty __init__); only synthetic inputs needed.
    key = jax.random.PRNGKey(0)

    # (cells, genes) -- small, evenly tiled case; auto row tile, auto core count.
    N, G = 16, 256
    mean, disp, pi, x = _make_inputs(key, N, G)

    loss_nb = jax.block_until_ready(zinb_loss(mean, disp, pi, x))
    ref_nb = jax.block_until_ready(_zinb_loss_ref(mean, disp, pi, x))
    assert jnp.allclose(loss_nb, ref_nb, rtol=1e-4, atol=1e-4), (loss_nb, ref_nb)

    loss_zero = jax.block_until_ready(zinb_loss(mean, disp, pi, None))
    ref_zero = jax.block_until_ready(_zinb_loss_ref(mean, disp, pi, None))
    assert jnp.allclose(loss_zero, ref_zero, rtol=1e-4, atol=1e-4), (loss_zero, ref_zero)

    # bf16 inputs on the HBM-bound zero branch (kernel upcasts to f32).
    mean_b, disp_b, pi_b = (mean.astype(jnp.bfloat16), disp.astype(jnp.bfloat16),
                            pi.astype(jnp.bfloat16))
    loss_z_bf = jax.block_until_ready(zinb_loss(mean_b, disp_b, pi_b, None))
    ref_z_bf = jax.block_until_ready(_zinb_loss_ref(
        mean_b.astype(jnp.float32), disp_b.astype(jnp.float32),
        pi_b.astype(jnp.float32), None))
    assert jnp.allclose(loss_z_bf, ref_z_bf, rtol=1e-3, atol=1e-3), (loss_z_bf, ref_z_bf)

    # Ragged row count + forced small tile + forced 2-way super-block split:
    # exercises the masked partial tile and the pl.when-gated out-of-range step.
    N2 = 20
    mean2, disp2, pi2, x2 = _make_inputs(jax.random.PRNGKey(1), N2, G)

    loss_nb2 = jax.block_until_ready(
        zinb_loss(mean2, disp2, pi2, x2, row_tile=8, num_parallel=2))
    ref_nb2 = jax.block_until_ready(_zinb_loss_ref(mean2, disp2, pi2, x2))
    assert jnp.allclose(loss_nb2, ref_nb2, rtol=1e-4, atol=1e-4), (loss_nb2, ref_nb2)

    loss_z2 = jax.block_until_ready(zinb_loss(mean2, disp2, pi2, None, row_tile=8))
    ref_z2 = jax.block_until_ready(_zinb_loss_ref(mean2, disp2, pi2, None))
    assert jnp.allclose(loss_z2, ref_z2, rtol=1e-4, atol=1e-4), (loss_z2, ref_z2)

    print("KERNEL_OK")
</pallas_src>

<mosaic_0001>
module attributes {stable_mosaic.version = 11 : i64} {
  func.func @_zinb_nb_kernel(%arg0: i32, %arg1: i32, %arg2: memref<16x256xf32, #tpu.memory_space<vmem>>, %arg3: memref<16x256xf32, #tpu.memory_space<vmem>>, %arg4: memref<16x256xf32, #tpu.memory_space<vmem>>, %arg5: memref<16x256xf32, #tpu.memory_space<vmem>>, %arg6: memref<1x8x256xf32, #tpu.memory_space<vmem>>) attributes {dimension_semantics = [#tpu.dimension_semantics<parallel>, #tpu.dimension_semantics<arbitrary>], iteration_bounds = array<i64: 1, 1>, scalar_prefetch = 0 : i64, scratch_operands = 0 : i64, tpu.core_type = #tpu.core_type<tc>, window_params = [{transform_indices = @transform_0, window_bounds = array<i64: 16, 256>}, {transform_indices = @transform_1, window_bounds = array<i64: 16, 256>}, {transform_indices = @transform_2, window_bounds = array<i64: 16, 256>}, {transform_indices = @transform_3, window_bounds = array<i64: 16, 256>}, {transform_indices = @transform_4, window_bounds = array<i64: 1, 8, 256>}]} {
    %c0_i32 = arith.constant 0 : i32
    %0 = arith.cmpi eq, %arg1, %c0_i32 : i32
    %1 = arith.extui %0 : i1 to i32
    %c0_i32_0 = arith.constant 0 : i32
    %2 = arith.cmpi ne, %1, %c0_i32_0 : i32
    scf.if %2 {
      %cst_65 = arith.constant 0.000000e+00 : f32
      %186 = vector.broadcast %cst_65 : f32 to vector<1x8x256xf32>
      %c0_66 = arith.constant 0 : index
      %c0_67 = arith.constant 0 : index
      %c0_68 = arith.constant 0 : index
      %187 = vector.load %arg6[%c0_66, %c0_67, %c0_68] : memref<1x8x256xf32, #tpu.memory_space<vmem>>, vector<1x8x256xf32>
      tpu.vector_store %arg6[%c0_66, %c0_67, %c0_68], %186 {strides = array<i32>} : memref<1x8x256xf32, #tpu.memory_space<vmem>>, vector<1x8x256xf32>,
    } else {
    }
    %c0 = arith.constant 0 : index
    %c0_1 = arith.constant 0 : index
    %3 = vector.load %arg2[%c0, %c0_1] : memref<16x256xf32, #tpu.memory_space<vmem>>, vector<16x256xf32>
    %c0_2 = arith.constant 0 : index
    %c0_3 = arith.constant 0 : index
    %4 = vector.load %arg3[%c0_2, %c0_3] : memref<16x256xf32, #tpu.memory_space<vmem>>, vector<16x256xf32>
    %c0_4 = arith.constant 0 : index
    %c0_5 = arith.constant 0 : index
    %5 = vector.load %arg4[%c0_4, %c0_5] : memref<16x256xf32, #tpu.memory_space<vmem>>, vector<16x256xf32>
    %c0_6 = arith.constant 0 : index
    %c0_7 = arith.constant 0 : index
    %6 = vector.load %arg5[%c0_6, %c0_7] : memref<16x256xf32, #tpu.memory_space<vmem>>, vector<16x256xf32>
    %cst = arith.constant 1.000000e-10 : f32
    %7 = vector.broadcast %cst : f32 to vector<16x256xf32>
    %8 = arith.addf %4, %7 : vector<16x256xf32>
    %cst_8 = arith.constant 1.000000e+00 : f32
    %9 = vector.broadcast %cst_8 : f32 to vector<16x256xf32>
    %10 = arith.addf %6, %9 : vector<16x256xf32>
    %11 = arith.addf %6, %8 : vector<16x256xf32>
    %cst_9 = arith.constant 8.000000e+00 : f32
    %12 = vector.broadcast %cst_9 : f32 to vector<16x256xf32>
    %13 = arith.addf %8, %12 : vector<16x256xf32>
    %14 = math.log %13 : vector<16x256xf32>
    %15 = tpu.reciprocal %13 {approx = true} : vector<16x256xf32> -> vector<16x256xf32>
    %16 = arith.mulf %15, %15 : vector<16x256xf32>
    %cst_10 = arith.constant 7.93650805E-4 : f32
    %17 = vector.broadcast %cst_10 : f32 to vector<16x256xf32>
    %18 = arith.mulf %16, %17 : vector<16x256xf32>
    %cst_11 = arith.constant 0.00277777785 : f32
    %19 = vector.broadcast %cst_11 : f32 to vector<16x256xf32>
    %20 = arith.subf %19, %18 : vector<16x256xf32>
    %21 = arith.mulf %16, %20 : vector<16x256xf32>
    %cst_12 = arith.constant 0.0833333358 : f32
    %22 = vector.broadcast %cst_12 : f32 to vector<16x256xf32>
    %23 = arith.subf %22, %21 : vector<16x256xf32>
    %24 = arith.mulf %15, %23 : vector<16x256xf32>
    %cst_13 = arith.constant 5.000000e-01 : f32
    %25 = vector.broadcast %cst_13 : f32 to vector<16x256xf32>
    %26 = arith.subf %13, %25 : vector<16x256xf32>
    %27 = arith.mulf %26, %14 : vector<16x256xf32>
    %28 = arith.subf %27, %13 : vector<16x256xf32>
    %cst_14 = arith.constant 0.918938517 : f32
    %29 = vector.broadcast %cst_14 : f32 to vector<16x256xf32>
    %30 = arith.addf %28, %29 : vector<16x256xf32>
    %31 = arith.addf %30, %24 : vector<16x256xf32>
    %cst_15 = arith.constant 8.000000e+00 : f32
    %32 = vector.broadcast %cst_15 : f32 to vector<16x256xf32>
    %33 = arith.addf %10, %32 : vector<16x256xf32>
    %34 = math.log %33 : vector<16x256xf32>
    %35 = tpu.reciprocal %33 {approx = true} : vector<16x256xf32> -> vector<16x256xf32>
    %36 = arith.mulf %35, %35 : vector<16x256xf32>
    %cst_16 = arith.constant 7.93650805E-4 : f32
    %37 = vector.broadcast %cst_16 : f32 to vector<16x256xf32>
    %38 = arith.mulf %36, %37 : vector<16x256xf32>
    %cst_17 = arith.constant 0.00277777785 : f32
    %39 = vector.broadcast %cst_17 : f32 to vector<16x256xf32>
    %40 = arith.subf %39, %38 : vector<16x256xf32>
    %41 = arith.mulf %36, %40 : vector<16x256xf32>
    %cst_18 = arith.constant 0.0833333358 : f32
    %42 = vector.broadcast %cst_18 : f32 to vector<16x256xf32>
    %43 = arith.subf %42, %41 : vector<16x256xf32>
    %44 = arith.mulf %35, %43 : vector<16x256xf32>
    %cst_19 = arith.constant 5.000000e-01 : f32
    %45 = vector.broadcast %cst_19 : f32 to vector<16x256xf32>
    %46 = arith.subf %33, %45 : vector<16x256xf32>
    %47 = arith.mulf %46, %34 : vector<16x256xf32>
    %48 = arith.subf %47, %33 : vector<16x256xf32>
    %cst_20 = arith.constant 0.918938517 : f32
    %49 = vector.broadcast %cst_20 : f32 to vector<16x256xf32>
    %50 = arith.addf %48, %49 : vector<16x256xf32>
    %51 = arith.addf %50, %44 : vector<16x256xf32>
    %52 = arith.addf %31, %51 : vector<16x256xf32>
    %cst_21 = arith.constant 8.000000e+00 : f32
    %53 = vector.broadcast %cst_21 : f32 to vector<16x256xf32>
    %54 = arith.addf %11, %53 : vector<16x256xf32>
    %55 = math.log %54 : vector<16x256xf32>
    %56 = tpu.reciprocal %54 {approx = true} : vector<16x256xf32> -> vector<16x256xf32>
    %57 = arith.mulf %56, %56 : vector<16x256xf32>
    %cst_22 = arith.constant 7.93650805E-4 : f32
    %58 = vector.broadcast %cst_22 : f32 to vector<16x256xf32>
    %59 = arith.mulf %57, %58 : vector<16x256xf32>
    %cst_23 = arith.constant 0.00277777785 : f32
    %60 = vector.broadcast %cst_23 : f32 to vector<16x256xf32>
    %61 = arith.subf %60, %59 : vector<16x256xf32>
    %62 = arith.mulf %57, %61 : vector<16x256xf32>
    %cst_24 = arith.constant 0.0833333358 : f32
    %63 = vector.broadcast %cst_24 : f32 to vector<16x256xf32>
    %64 = arith.subf %63, %62 : vector<16x256xf32>
    %65 = arith.mulf %56, %64 : vector<16x256xf32>
    %cst_25 = arith.constant 5.000000e-01 : f32
    %66 = vector.broadcast %cst_25 : f32 to vector<16x256xf32>
    %67 = arith.subf %54, %66 : vector<16x256xf32>
    %68 = arith.mulf %67, %55 : vector<16x256xf32>
    %69 = arith.subf %68, %54 : vector<16x256xf32>
    %cst_26 = arith.constant 0.918938517 : f32
    %70 = vector.broadcast %cst_26 : f32 to vector<16x256xf32>
    %71 = arith.addf %69, %70 : vector<16x256xf32>
    %72 = arith.addf %71, %65 : vector<16x256xf32>
    %73 = arith.subf %52, %72 : vector<16x256xf32>
    %cst_27 = arith.constant 1.000000e+00 : f32
    %74 = vector.broadcast %cst_27 : f32 to vector<16x256xf32>
    %75 = arith.addf %8, %74 : vector<16x256xf32>
    %76 = arith.mulf %8, %75 : vector<16x256xf32>
    %cst_28 = arith.constant 2.000000e+00 : f32
    %77 = vector.broadcast %cst_28 : f32 to vector<16x256xf32>
    %78 = arith.addf %8, %77 : vector<16x256xf32>
    %cst_29 = arith.constant 3.000000e+00 : f32
    %79 = vector.broadcast %cst_29 : f32 to vector<16x256xf32>
    %80 = arith.addf %8, %79 : vector<16x256xf32>
    %81 = arith.mulf %78, %80 : vector<16x256xf32>
    %82 = arith.mulf %76, %81 : vector<16x256xf32>
    %cst_30 = arith.constant 9.53674316E-7 : f32
    %83 = vector.broadcast %cst_30 : f32 to vector<16x256xf32>
    %84 = arith.mulf %82, %83 : vector<16x256xf32>
    %cst_31 = arith.constant 4.000000e+00 : f32
    %85 = vector.broadcast %cst_31 : f32 to vector<16x256xf32>
    %86 = arith.addf %8, %85 : vector<16x256xf32>
    %cst_32 = arith.constant 5.000000e+00 : f32
    %87 = vector.broadcast %cst_32 : f32 to vector<16x256xf32>
    %88 = arith.addf %8, %87 : vector<16x256xf32>
    %89 = arith.mulf %86, %88 : vector<16x256xf32>
    %cst_33 = arith.constant 6.000000e+00 : f32
    %90 = vector.broadcast %cst_33 : f32 to vector<16x256xf32>
    %91 = arith.addf %8, %90 : vector<16x256xf32>
    %cst_34 = arith.constant 7.000000e+00 : f32
    %92 = vector.broadcast %cst_34 : f32 to vector<16x256xf32>
    %93 = arith.addf %8, %92 : vector<16x256xf32>
    %94 = arith.mulf %91, %93 : vector<16x256xf32>
    %95 = arith.mulf %89, %94 : vector<16x256xf32>
    %cst_35 = arith.constant 9.53674316E-7 : f32
    %96 = vector.broadcast %cst_35 : f32 to vector<16x256xf32>
    %97 = arith.mulf %95, %96 : vector<16x256xf32>
    %cst_36 = arith.constant 1.000000e+00 : f32
    %98 = vector.broadcast %cst_36 : f32 to vector<16x256xf32>
    %99 = arith.addf %10, %98 : vector<16x256xf32>
    %100 = arith.mulf %10, %99 : vector<16x256xf32>
    %cst_37 = arith.constant 2.000000e+00 : f32
    %101 = vector.broadcast %cst_37 : f32 to vector<16x256xf32>
    %102 = arith.addf %10, %101 : vector<16x256xf32>
    %cst_38 = arith.constant 3.000000e+00 : f32
    %103 = vector.broadcast %cst_38 : f32 to vector<16x256xf32>
    %104 = arith.addf %10, %103 : vector<16x256xf32>
    %105 = arith.mulf %102, %104 : vector<16x256xf32>
    %106 = arith.mulf %100, %105 : vector<16x256xf32>
    %cst_39 = arith.constant 9.53674316E-7 : f32
    %107 = vector.broadcast %cst_39 : f32 to vector<16x256xf32>
    %108 = arith.mulf %106, %107 : vector<16x256xf32>
    %cst_40 = arith.constant 4.000000e+00 : f32
    %109 = vector.broadcast %cst_40 : f32 to vector<16x256xf32>
    %110 = arith.addf %10, %109 : vector<16x256xf32>
    %cst_41 = arith.constant 5.000000e+00 : f32
    %111 = vector.broadcast %cst_41 : f32 to vector<16x256xf32>
    %112 = arith.addf %10, %111 : vector<16x256xf32>
    %113 = arith.mulf %110, %112 : vector<16x256xf32>
    %cst_42 = arith.constant 6.000000e+00 : f32
    %114 = vector.broadcast %cst_42 : f32 to vector<16x256xf32>
    %115 = arith.addf %10, %114 : vector<16x256xf32>
    %cst_43 = arith.constant 7.000000e+00 : f32
    %116 = vector.broadcast %cst_43 : f32 to vector<16x256xf32>
    %117 = arith.addf %10, %116 : vector<16x256xf32>
    %118 = arith.mulf %115, %117 : vector<16x256xf32>
    %119 = arith.mulf %113, %118 : vector<16x256xf32>
    %cst_44 = arith.constant 9.53674316E-7 : f32
    %120 = vector.broadcast %cst_44 : f32 to vector<16x256xf32>
    %121 = arith.mulf %119, %120 : vector<16x256xf32>
    %cst_45 = arith.constant 1.000000e+00 : f32
    %122 = vector.broadcast %cst_45 : f32 to vector<16x256xf32>
    %123 = arith.addf %11, %122 : vector<16x256xf32>
    %124 = arith.mulf %11, %123 : vector<16x256xf32>
    %cst_46 = arith.constant 2.000000e+00 : f32
    %125 = vector.broadcast %cst_46 : f32 to vector<16x256xf32>
    %126 = arith.addf %11, %125 : vector<16x256xf32>
    %cst_47 = arith.constant 3.000000e+00 : f32
    %127 = vector.broadcast %cst_47 : f32 to vector<16x256xf32>
    %128 = arith.addf %11, %127 : vector<16x256xf32>
    %129 = arith.mulf %126, %128 : vector<16x256xf32>
    %130 = arith.mulf %124, %129 : vector<16x256xf32>
    %cst_48 = arith.constant 9.53674316E-7 : f32
    %131 = vector.broadcast %cst_48 : f32 to vector<16x256xf32>
    %132 = arith.mulf %130, %131 : vector<16x256xf32>
    %cst_49 = arith.constant 4.000000e+00 : f32
    %133 = vector.broadcast %cst_49 : f32 to vector<16x256xf32>
    %134 = arith.addf %11, %133 : vector<16x256xf32>
    %cst_50 = arith.constant 5.000000e+00 : f32
    %135 = vector.broadcast %cst_50 : f32 to vector<16x256xf32>
    %136 = arith.addf %11, %135 : vector<16x256xf32>
    %137 = arith.mulf %134, %136 : vector<16x256xf32>
    %cst_51 = arith.constant 6.000000e+00 : f32
    %138 = vector.broadcast %cst_51 : f32 to vector<16x256xf32>
    %139 = arith.addf %11, %138 : vector<16x256xf32>
    %cst_52 = arith.constant 7.000000e+00 : f32
    %140 = vector.broadcast %cst_52 : f32 to vector<16x256xf32>
    %141 = arith.addf %11, %140 : vector<16x256xf32>
    %142 = arith.mulf %139, %141 : vector<16x256xf32>
    %143 = arith.mulf %137, %142 : vector<16x256xf32>
    %cst_53 = arith.constant 9.53674316E-7 : f32
    %144 = vector.broadcast %cst_53 : f32 to vector<16x256xf32>
    %145 = arith.mulf %143, %144 : vector<16x256xf32>
    %cst_54 = arith.constant 9.53674316E-7 : f32
    %146 = vector.broadcast %cst_54 : f32 to vector<16x256xf32>
    %147 = arith.mulf %132, %146 : vector<16x256xf32>
    %148 = arith.mulf %84, %108 : vector<16x256xf32>
    %149 = arith.divf %147, %148 : vector<16x256xf32>
    %150 = math.log %149 : vector<16x256xf32>
    %cst_55 = arith.constant 9.53674316E-7 : f32
    %151 = vector.broadcast %cst_55 : f32 to vector<16x256xf32>
    %152 = arith.mulf %145, %151 : vector<16x256xf32>
    %153 = arith.mulf %97, %121 : vector<16x256xf32>
    %154 = arith.divf %152, %153 : vector<16x256xf32>
    %155 = math.log %154 : vector<16x256xf32>
    %156 = arith.addf %150, %155 : vector<16x256xf32>
    %157 = arith.addf %73, %156 : vector<16x256xf32>
    %158 = math.log %8 : vector<16x256xf32>
    %cst_56 = arith.constant 1.000000e-10 : f32
    %159 = vector.broadcast %cst_56 : f32 to vector<16x256xf32>
    %160 = arith.addf %3, %159 : vector<16x256xf32>
    %161 = math.log %160 : vector<16x256xf32>
    %162 = arith.addf %3, %8 : vector<16x256xf32>
    %163 = math.log %162 : vector<16x256xf32>
    %164 = arith.addf %4, %6 : vector<16x256xf32>
    %165 = arith.subf %163, %158 : vector<16x256xf32>
    %166 = arith.mulf %164, %165 : vector<16x256xf32>
    %167 = arith.subf %158, %161 : vector<16x256xf32>
    %168 = arith.mulf %6, %167 : vector<16x256xf32>
    %169 = arith.addf %166, %168 : vector<16x256xf32>
    %170 = arith.addf %157, %169 : vector<16x256xf32>
    %cst_57 = arith.constant 1.000000e+00 : f32
    %171 = vector.broadcast %cst_57 : f32 to vector<16x256xf32>
    %172 = arith.subf %171, %5 : vector<16x256xf32>
    %cst_58 = arith.constant 1.000000e-10 : f32
    %173 = vector.broadcast %cst_58 : f32 to vector<16x256xf32>
    %174 = arith.addf %172, %173 : vector<16x256xf32>
    %175 = math.log %174 : vector<16x256xf32>
    %176 = arith.subf %170, %175 : vector<16x256xf32>
    %c0_59 = arith.constant 0 : index
    %c0_60 = arith.constant 0 : index
    %c0_61 = arith.constant 0 : index
    %177 = vector.load %arg6[%c0_59, %c0_60, %c0_61] : memref<1x8x256xf32, #tpu.memory_space<vmem>>, vector<1x8x256xf32>
    %178 = vector.shape_cast %177 : vector<1x8x256xf32> to vector<8x256xf32>
    %179 = vector.extract_strided_slice %176 {offsets = [0, 0], sizes = [8, 256], strides = [1, 1]} : vector<16x256xf32> to vector<8x256xf32>
    %180 = vector.extract_strided_slice %176 {offsets = [8, 0], sizes = [8, 256], strides = [1, 1]} : vector<16x256xf32> to vector<8x256xf32>
    %181 = arith.addf %179, %180 : vector<8x256xf32>
    %182 = arith.addf %178, %181 : vector<8x256xf32>
    %c0_62 = arith.constant 0 : index
    %c0_63 = arith.constant 0 : index
    %c0_64 = arith.constant 0 : index
    %183 = vector.load %arg6[%c0_62, %c0_63, %c0_64] : memref<1x8x256xf32, #tpu.memory_space<vmem>>, vector<1x8x256xf32>
    %184 = vector.shape_cast %183 : vector<1x8x256xf32> to vector<8x256xf32>
    %185 = vector.shape_cast %182 : vector<8x256xf32> to vector<1x8x256xf32>
    tpu.vector_store %arg6[%c0_62, %c0_63, %c0_64], %185 {strides = array<i32>} : memref<1x8x256xf32, #tpu.memory_space<vmem>>, vector<1x8x256xf32>,
    return
  }
  func.func @transform_0(%arg0: i32, %arg1: i32) -> (i32, i32) {
    %c1_i32 = arith.constant 1 : i32
    %0 = arith.muli %arg0, %c1_i32 : i32
    %1 = arith.addi %0, %arg1 : i32
    %c0_i32 = arith.constant 0 : i32
    %2 = arith.minsi %1, %c0_i32 : i32
    %c0_i32_0 = arith.constant 0 : i32
    %c0_i32_1 = arith.constant 0 : i32
    return %2, %c0_i32_0 : i32, i32
  }
  func.func @transform_1(%arg0: i32, %arg1: i32) -> (i32, i32) {
    %c1_i32 = arith.constant 1 : i32
    %0 = arith.muli %arg0, %c1_i32 : i32
    %1 = arith.addi %0, %arg1 : i32
    %c0_i32 = arith.constant 0 : i32
    %2 = arith.minsi %1, %c0_i32 : i32
    %c0_i32_0 = arith.constant 0 : i32
    %c0_i32_1 = arith.constant 0 : i32
    return %2, %c0_i32_0 : i32, i32
  }
  func.func @transform_2(%arg0: i32, %arg1: i32) -> (i32, i32) {
    %c1_i32 = arith.constant 1 : i32
    %0 = arith.muli %arg0, %c1_i32 : i32
    %1 = arith.addi %0, %arg1 : i32
    %c0_i32 = arith.constant 0 : i32
    %2 = arith.minsi %1, %c0_i32 : i32
    %c0_i32_0 = arith.constant 0 : i32
    %c0_i32_1 = arith.constant 0 : i32
    return %2, %c0_i32_0 : i32, i32
  }
  func.func @transform_3(%arg0: i32, %arg1: i32) -> (i32, i32) {
    %c1_i32 = arith.constant 1 : i32
    %0 = arith.muli %arg0, %c1_i32 : i32
    %1 = arith.addi %0, %arg1 : i32
    %c0_i32 = arith.constant 0 : i32
    %2 = arith.minsi %1, %c0_i32 : i32
    %c0_i32_0 = arith.constant 0 : i32
    %c0_i32_1 = arith.constant 0 : i32
    return %2, %c0_i32_0 : i32, i32
  }
  func.func @transform_4(%arg0: i32, %arg1: i32) -> (i32, i32, i32) {
    %c0_i32 = arith.constant 0 : i32
    %c0_i32_0 = arith.constant 0 : i32
    %c0_i32_1 = arith.constant 0 : i32
    return %arg0, %c0_i32, %c0_i32_0 : i32, i32, i32
  }
}

</mosaic_0001>

<llo_original>
// kernel: tpu_custom_call.1
$region0: #{tpu_custom_call.1}
  #allocation0 [shape = 'u32[]', space=smem, size = 0x4, offset = 0x4, fixed_abs, tag = 'smem constant byte address 0x4 - core index']
  #allocation1 [shape = 'u32[144,128]{1,0:T(1,128)}', space=vmem, size = 0x12000, scoped, tag = 'internal scratch']
  %s0 = inlined_call_operand.hbm [shape: f32[16,256], index: 0, kind: input, shape index: {}]
  %s1 = inlined_call_operand.hbm [shape: f32[16,256], index: 1, kind: input, shape index: {}]
  %s2 = inlined_call_operand.hbm [shape: f32[16,256], index: 2, kind: input, shape index: {}]
  %s3 = inlined_call_operand.hbm [shape: f32[16,256], index: 3, kind: input, shape index: {}]
  %s4 = inlined_call_operand.hbm [shape: f32[1,8,256], index: 4, kind: output, shape index: {}]
  %s5 = sld [smem:[#allocation0]]
  $region46: #{tpu_custom_call.1} parent=0
    _
  %s7 = ssub.s32 1, %s5
  %s8 = scalar_select 0, %s7, %s5
  $region1: #{tpu_custom_call.1} parent=0
    #allocation2 [shape = 'u8[16384]{0}', space=vmem, size = 0x4000, scoped, tag = 'input window, operand 0, single buffered']
    #allocation3 [shape = 's32[1]{0}', space=sflag, size = 0x4, scoped, tag = 'scoped memory for tpu_custom_call.1']
    #allocation4 [shape = 's32[1]{0}', space=sflag, size = 0x4, scoped, tag = 'scoped memory for tpu_custom_call.1']
    #allocation5 [shape = 'u8[16384]{0}', space=vmem, size = 0x4000, scoped, tag = 'input window, operand 1, single buffered']
    #allocation6 [shape = 's32[1]{0}', space=sflag, size = 0x4, scoped, tag = 'scoped memory for tpu_custom_call.1']
    #allocation7 [shape = 'u8[16384]{0}', space=vmem, size = 0x4000, scoped, tag = 'input window, operand 2, single buffered']
    #allocation8 [shape = 'u8[16384]{0}', space=vmem, size = 0x4000, scoped, tag = 'input window, operand 3, single buffered']
    #allocation9 [shape = 's32[1]{0}', space=sflag, size = 0x4, scoped, tag = 'scoped memory for tpu_custom_call.1']
    #allocation10 [shape = 'u8[8192]{0}', space=vmem, size = 0x2000, scoped, tag = 'output window, operand 0, single buffered']
    %9 = vsyncpa [#allocation3], 0
    %10 = vsyncpa [#allocation6], 0
    %11 = vsyncpa [#allocation9], 0
    %12 = vsyncpa [#allocation4], 0
    // Predicated region
    $region2: #{tpu_custom_call.1} parent=1 // pred_check
      _
    $region3: #{tpu_custom_call.1} parent=1 // pred_check_branch
      %14 = sbr.rel (0) target = $region5
    $region4: #{tpu_custom_call.1} parent=1 // pred_region
      %s15 = sadd.s32 0, 0
      %p16 = scmp.lt.s32.totalorder %s15, 0
      %s17 = scalar_select %p16, %s15, 0
      %s18 = smul.u32 2, %s17
      %s20 = ssub.s32 512, 512
      %21 = vsyncadd [#allocation3], %s20
      %s22 = smul.addr %s18, 2
      %s23 = smul.addr %s22, 128
      %s24 = scalar_lea.hbm %s0, %s23
      %s25 = sshll.u32 [#allocation2], 4
      %s26 = int_to_ptr.vmem [resolvable:$true] %s25
      %31 = dma.hbm_to_vmem [thread:$0]  %s24, 512, %s26, [#allocation3], 256, 256, 16
    $region5: #{tpu_custom_call.1} parent=1 // pred_fallthru
      _
    // Predicated region
    $region6: #{tpu_custom_call.1} parent=1 // pred_check
      _
    $region7: #{tpu_custom_call.1} parent=1 // pred_check_branch
      %33 = sbr.rel (0) target = $region9
    $region8: #{tpu_custom_call.1} parent=1 // pred_region
      %s34 = sadd.s32 0, 0
      %p35 = scmp.lt.s32.totalorder %s34, 0
      %s36 = scalar_select %p35, %s34, 0
      %s37 = smul.u32 2, %s36
      %s39 = ssub.s32 512, 512
      %40 = vsyncadd [#allocation6], %s39
      %s41 = smul.addr %s37, 2
      %s42 = smul.addr %s41, 128
      %s43 = scalar_lea.hbm %s1, %s42
      %s44 = sshll.u32 [#allocation5], 4
      %s45 = int_to_ptr.vmem [resolvable:$true] %s44
      %50 = dma.hbm_to_vmem [thread:$0]  %s43, 512, %s45, [#allocation6], 256, 256, 16
    $region9: #{tpu_custom_call.1} parent=1 // pred_fallthru
      _
    // Predicated region
    $region10: #{tpu_custom_call.1} parent=1 // pred_check
      _
    $region11: #{tpu_custom_call.1} parent=1 // pred_check_branch
      %52 = sbr.rel (0) target = $region13
    $region12: #{tpu_custom_call.1} parent=1 // pred_region
      %s53 = sadd.s32 0, 0
      %p54 = scmp.lt.s32.totalorder %s53, 0
      %s55 = scalar_select %p54, %s53, 0
      %s56 = smul.u32 2, %s55
      %s58 = ssub.s32 512, 512
      %59 = vsyncadd [#allocation6], %s58
      %s60 = smul.addr %s56, 2
      %s61 = smul.addr %s60, 128
      %s62 = scalar_lea.hbm %s2, %s61
      %s63 = sshll.u32 [#allocation7], 4
      %s64 = int_to_ptr.vmem [resolvable:$true] %s63
      %69 = dma.hbm_to_vmem [thread:$0]  %s62, 512, %s64, [#allocation6], 256, 256, 16
    $region13: #{tpu_custom_call.1} parent=1 // pred_fallthru
      _
    // Predicated region
    $region14: #{tpu_custom_call.1} parent=1 // pred_check
      _
    $region15: #{tpu_custom_call.1} parent=1 // pred_check_branch
      %71 = sbr.rel (0) target = $region17
    $region16: #{tpu_custom_call.1} parent=1 // pred_region
      %s72 = sadd.s32 0, 0
      %p73 = scmp.lt.s32.totalorder %s72, 0
      %s74 = scalar_select %p73, %s72, 0
      %s75 = smul.u32 2, %s74
      %s77 = ssub.s32 512, 512
      %78 = vsyncadd [#allocation9], %s77
      %s79 = smul.addr %s75, 2
      %s80 = smul.addr %s79, 128
      %s81 = scalar_lea.hbm %s3, %s80
      %s82 = sshll.u32 [#allocation8], 4
      %s83 = int_to_ptr.vmem [resolvable:$true] %s82
      %88 = dma.hbm_to_vmem [thread:$0]  %s81, 512, %s83, [#allocation9], 256, 256, 16
    $region17: #{tpu_custom_call.1} parent=1 // pred_fallthru
      _
    // Predicated region
    $region18: #{tpu_custom_call.1} parent=1 // pred_check
      _
    $region19: #{tpu_custom_call.1} parent=1 // pred_check_branch
      %90 = sbr.rel (0) target = $region21
    $region20: #{tpu_custom_call.1} parent=1 // pred_region
      %91 = dma.done [#allocation3], 512
    $region21: #{tpu_custom_call.1} parent=1 // pred_fallthru
      _
    // Predicated region
    $region22: #{tpu_custom_call.1} parent=1 // pred_check
      _
    $region23: #{tpu_custom_call.1} parent=1 // pred_check_branch
      %93 = sbr.rel (0) target = $region25
    $region24: #{tpu_custom_call.1} parent=1 // pred_region
      %94 = dma.done [#allocation6], 512
    $region25: #{tpu_custom_call.1} parent=1 // pred_fallthru
      _
    // Predicated region
    $region26: #{tpu_custom_call.1} parent=1 // pred_check
      _
    $region27: #{tpu_custom_call.1} parent=1 // pred_check_branch
      %96 = sbr.rel (0) target = $region29
    $region28: #{tpu_custom_call.1} parent=1 // pred_region
      %97 = dma.done [#allocation6], 512
    $region29: #{tpu_custom_call.1} parent=1 // pred_fallthru
      _
    // Predicated region
    $region30: #{tpu_custom_call.1} parent=1 // pred_check
      _
    $region31: #{tpu_custom_call.1} parent=1 // pred_check_branch
      %99 = sbr.rel (0) target = $region33
    $region32: #{tpu_custom_call.1} parent=1 // pred_region
      %100 = dma.done [#allocation9], 512
    $region33: #{tpu_custom_call.1} parent=1 // pred_fallthru
      _
    %s101 = sadd.s32 0, 0
    %p102 = scmp.lt.s32.totalorder %s101, 0
    %s103 = scalar_select %p102, %s101, 0
    %s104 = smul.u32 2, %s103
    %s105 = sadd.s32 0, 0
    %p106 = scmp.lt.s32.totalorder %s105, 0
    %s107 = scalar_select %p106, %s105, 0
    %s108 = smul.u32 2, %s107
    %s109 = sadd.s32 0, 0
    %p110 = scmp.lt.s32.totalorder %s109, 0
    %s111 = scalar_select %p110, %s109, 0
    %s112 = smul.u32 2, %s111
    %s113 = sadd.s32 0, 0
    %p114 = scmp.lt.s32.totalorder %s113, 0
    %s115 = scalar_select %p114, %s113, 0
    %s116 = smul.u32 2, %s115
    %p117 = scmp.eq.s32.totalorder 0, 0
    // Predicated region
    $region34: #{tpu_custom_call.1} parent=1 // pred_check
      %p118 = pneg %p117
    $region35: #{tpu_custom_call.1} parent=1 // pred_check_branch
      %120 = sbr.rel (%p118) target = $region37
    $region36: #{tpu_custom_call.1} parent=1 // pred_region
      %121 = vst [vmem:[#allocation10] sm:$0xff] 0.0
      %122 = vst [vmem:[#allocation10 + $0x8] sm:$0xff] 0.0
    $region37: #{tpu_custom_call.1} parent=1 // pred_fallthru
      _
    %v123 = vld [vmem:[#allocation2] sm:$0xff]
    %v124 = vld [vmem:[#allocation2 + $0x8] sm:$0xff]
    %v125 = vld [vmem:[#allocation2 + $0x10] sm:$0xff]
    %v126 = vld [vmem:[#allocation2 + $0x18] sm:$0xff]
    %v127 = vld [vmem:[#allocation5] sm:$0xff]
    %v128 = vld [vmem:[#allocation5 + $0x8] sm:$0xff]
    %v129 = vld [vmem:[#allocation5 + $0x10] sm:$0xff]
    %v130 = vld [vmem:[#allocation5 + $0x18] sm:$0xff]
    %v131 = vld [vmem:[#allocation7] sm:$0xff]
    %v132 = vld [vmem:[#allocation7 + $0x8] sm:$0xff]
    %v133 = vld [vmem:[#allocation7 + $0x10] sm:$0xff]
    %v134 = vld [vmem:[#allocation7 + $0x18] sm:$0xff]
    %v135 = vld [vmem:[#allocation8] sm:$0xff]
    %v136 = vld [vmem:[#allocation8 + $0x8] sm:$0xff]
    %v137 = vld [vmem:[#allocation8 + $0x10] sm:$0xff]
    %v138 = vld [vmem:[#allocation8 + $0x18] sm:$0xff]
    %v139 = vadd.f32 %v127, 1e-10
    %v140 = vadd.f32 %v128, 1e-10
    %v141 = vadd.f32 %v129, 1e-10
    %v142 = vadd.f32 %v130, 1e-10
    %v143 = vadd.f32 %v135, 1.0
    %v144 = vadd.f32 %v136, 1.0
    %v145 = vadd.f32 %v137, 1.0
    %v146 = vadd.f32 %v138, 1.0
    %v147 = vadd.f32 %v135, %v139
    %v148 = vadd.f32 %v136, %v140
    %v149 = vadd.f32 %v137, %v141
    %v150 = vadd.f32 %v138, %v142
    %v151 = vadd.f32 %v139, 8.0
    %v152 = vadd.f32 %v140, 8.0
    %v153 = vadd.f32 %v141, 8.0
    %v154 = vadd.f32 %v142, 8.0
    %v155 = vlog2.pop %v151
    %v156 = vmul.f32 %v155, 0.6931472
    %v157 = vlog2.pop %v152
    %v158 = vmul.f32 %v157, 0.6931472
    %v159 = vlog2.pop %v153
    %v160 = vmul.f32 %v159, 0.6931472
    %v161 = vlog2.pop %v154
    %v162 = vmul.f32 %v161, 0.6931472
    %v163 = vrcp.pop %v151
    %v164 = vrcp.pop %v152
    %v165 = vrcp.pop %v153
    %v166 = vrcp.pop %v154
    %v167 = vmul.f32 %v163, %v163
    %v168 = vmul.f32 %v164, %v164
    %v169 = vmul.f32 %v165, %v165
    %v170 = vmul.f32 %v166, %v166
    %v171 = vmul.f32 %v167, 0.0007936508
    %v172 = vmul.f32 %v168, 0.0007936508
    %v173 = vmul.f32 %v169, 0.0007936508
    %v174 = vmul.f32 %v170, 0.0007936508
    %v175 = vsub.f32 0.0027777778, %v171
    %v176 = vsub.f32 0.0027777778, %v172
    %v177 = vsub.f32 0.0027777778, %v173
    %v178 = vsub.f32 0.0027777778, %v174
    %v179 = vmul.f32 %v167, %v175
    %v180 = vmul.f32 %v168, %v176
    %v181 = vmul.f32 %v169, %v177
    %v182 = vmul.f32 %v170, %v178
    %v183 = vsub.f32 0.083333336, %v179
    %v184 = vsub.f32 0.083333336, %v180
    %v185 = vsub.f32 0.083333336, %v181
    %v186 = vsub.f32 0.083333336, %v182
    %v187 = vmul.f32 %v163, %v183
    %v188 = vmul.f32 %v164, %v184
    %v189 = vmul.f32 %v165, %v185
    %v190 = vmul.f32 %v166, %v186
    %v191 = vsub.f32 %v151, 0.5
    %v192 = vsub.f32 %v152, 0.5
    %v193 = vsub.f32 %v153, 0.5
    %v194 = vsub.f32 %v154, 0.5
    %v195 = vmul.f32 %v191, %v156
    %v196 = vmul.f32 %v192, %v158
    %v197 = vmul.f32 %v193, %v160
    %v198 = vmul.f32 %v194, %v162
    %v199 = vsub.f32 %v195, %v151
    %v200 = vsub.f32 %v196, %v152
    %v201 = vsub.f32 %v197, %v153
    %v202 = vsub.f32 %v198, %v154
    %v203 = vadd.f32 %v199, 0.9189385
    %v204 = vadd.f32 %v200, 0.9189385
    %v205 = vadd.f32 %v201, 0.9189385
    %v206 = vadd.f32 %v202, 0.9189385
    %v207 = vadd.f32 %v203, %v187
    %v208 = vadd.f32 %v204, %v188
    %v209 = vadd.f32 %v205, %v189
    %v210 = vadd.f32 %v206, %v190
    %v211 = vadd.f32 %v143, 8.0
    %v212 = vadd.f32 %v144, 8.0
    %v213 = vadd.f32 %v145, 8.0
    %v214 = vadd.f32 %v146, 8.0
    %v215 = vlog2.pop %v211
    %v216 = vmul.f32 %v215, 0.6931472
    %v217 = vlog2.pop %v212
    %v218 = vmul.f32 %v217, 0.6931472
    %v219 = vlog2.pop %v213
    %v220 = vmul.f32 %v219, 0.6931472
    %v221 = vlog2.pop %v214
    %v222 = vmul.f32 %v221, 0.6931472
    %v223 = vrcp.pop %v211
    %v224 = vrcp.pop %v212
    %v225 = vrcp.pop %v213
    %v226 = vrcp.pop %v214
    %v227 = vmul.f32 %v223, %v223
    %v228 = vmul.f32 %v224, %v224
    %v229 = vmul.f32 %v225, %v225
    %v230 = vmul.f32 %v226, %v226
    %v231 = vmul.f32 %v227, 0.0007936508
    %v232 = vmul.f32 %v228, 0.0007936508
    %v233 = vmul.f32 %v229, 0.0007936508
    %v234 = vmul.f32 %v230, 0.0007936508
    %v235 = vsub.f32 0.0027777778, %v231
    %v236 = vsub.f32 0.0027777778, %v232
    %v237 = vsub.f32 0.0027777778, %v233
    %v238 = vsub.f32 0.0027777778, %v234
    %v239 = vmul.f32 %v227, %v235
    %v240 = vmul.f32 %v228, %v236
    %v241 = vmul.f32 %v229, %v237
    %v242 = vmul.f32 %v230, %v238
    %v243 = vsub.f32 0.083333336, %v239
    %v244 = vsub.f32 0.083333336, %v240
    %v245 = vsub.f32 0.083333336, %v241
    %v246 = vsub.f32 0.083333336, %v242
    %v247 = vmul.f32 %v223, %v243
    %v248 = vmul.f32 %v224, %v244
    %v249 = vmul.f32 %v225, %v245
    %v250 = vmul.f32 %v226, %v246
    %v251 = vsub.f32 %v211, 0.5
    %v252 = vsub.f32 %v212, 0.5
    %v253 = vsub.f32 %v213, 0.5
    %v254 = vsub.f32 %v214, 0.5
    %v255 = vmul.f32 %v251, %v216
    %v256 = vmul.f32 %v252, %v218
    %v257 = vmul.f32 %v253, %v220
    %v258 = vmul.f32 %v254, %v222
    %v259 = vsub.f32 %v255, %v211
    %v260 = vsub.f32 %v256, %v212
    %v261 = vsub.f32 %v257, %v213
    %v262 = vsub.f32 %v258, %v214
    %v263 = vadd.f32 %v259, 0.9189385
    %v264 = vadd.f32 %v260, 0.9189385
    %v265 = vadd.f32 %v261, 0.9189385
    %v266 = vadd.f32 %v262, 0.9189385
    %v267 = vadd.f32 %v263, %v247
    %v268 = vadd.f32 %v264, %v248
    %v269 = vadd.f32 %v265, %v249
    %v270 = vadd.f32 %v266, %v250
    %v271 = vadd.f32 %v207, %v267
    %v272 = vadd.f32 %v208, %v268
    %v273 = vadd.f32 %v209, %v269
    %v274 = vadd.f32 %v210, %v270
    %v275 = vadd.f32 %v147, 8.0
    %v276 = vadd.f32 %v148, 8.0
    %v277 = vadd.f32 %v149, 8.0
    %v278 = vadd.f32 %v150, 8.0
    %v279 = vlog2.pop %v275
    %v280 = vmul.f32 %v279, 0.6931472
    %v281 = vlog2.pop %v276
    %v282 = vmul.f32 %v281, 0.6931472
    %v283 = vlog2.pop %v277
    %v284 = vmul.f32 %v283, 0.6931472
    %v285 = vlog2.pop %v278
    %v286 = vmul.f32 %v285, 0.6931472
    %v287 = vrcp.pop %v275
    %v288 = vrcp.pop %v276
    %v289 = vrcp.pop %v277
    %v290 = vrcp.pop %v278
    %v291 = vmul.f32 %v287, %v287
    %v292 = vmul.f32 %v288, %v288
    %v293 = vmul.f32 %v289, %v289
    %v294 = vmul.f32 %v290, %v290
    %v295 = vmul.f32 %v291, 0.0007936508
    %v296 = vmul.f32 %v292, 0.0007936508
    %v297 = vmul.f32 %v293, 0.0007936508
    %v298 = vmul.f32 %v294, 0.0007936508
    %v299 = vsub.f32 0.0027777778, %v295
    %v300 = vsub.f32 0.0027777778, %v296
    %v301 = vsub.f32 0.0027777778, %v297
    %v302 = vsub.f32 0.0027777778, %v298
    %v303 = vmul.f32 %v291, %v299
    %v304 = vmul.f32 %v292, %v300
    %v305 = vmul.f32 %v293, %v301
    %v306 = vmul.f32 %v294, %v302
    %v307 = vsub.f32 0.083333336, %v303
    %v308 = vsub.f32 0.083333336, %v304
    %v309 = vsub.f32 0.083333336, %v305
    %v310 = vsub.f32 0.083333336, %v306
    %v311 = vmul.f32 %v287, %v307
    %v312 = vmul.f32 %v288, %v308
    %v313 = vmul.f32 %v289, %v309
    %v314 = vmul.f32 %v290, %v310
    %v315 = vsub.f32 %v275, 0.5
    %v316 = vsub.f32 %v276, 0.5
    %v317 = vsub.f32 %v277, 0.5
    %v318 = vsub.f32 %v278, 0.5
    %v319 = vmul.f32 %v315, %v280
    %v320 = vmul.f32 %v316, %v282
    %v321 = vmul.f32 %v317, %v284
    %v322 = vmul.f32 %v318, %v286
    %v323 = vsub.f32 %v319, %v275
    %v324 = vsub.f32 %v320, %v276
    %v325 = vsub.f32 %v321, %v277
    %v326 = vsub.f32 %v322, %v278
    %v327 = vadd.f32 %v323, 0.9189385
    %v328 = vadd.f32 %v324, 0.9189385
    %v329 = vadd.f32 %v325, 0.9189385
    %v330 = vadd.f32 %v326, 0.9189385
    %v331 = vadd.f32 %v327, %v311
    %v332 = vadd.f32 %v328, %v312
    %v333 = vadd.f32 %v329, %v313
    %v334 = vadd.f32 %v330, %v314
    %v335 = vsub.f32 %v271, %v331
    %v336 = vsub.f32 %v272, %v332
    %v337 = vsub.f32 %v273, %v333
    %v338 = vsub.f32 %v274, %v334
    %v339 = vadd.f32 %v139, 1.0
    %v340 = vadd.f32 %v140, 1.0
    %v341 = vadd.f32 %v141, 1.0
    %v342 = vadd.f32 %v142, 1.0
    %v343 = vmul.f32 %v139, %v339
    %v344 = vmul.f32 %v140, %v340
    %v345 = vmul.f32 %v141, %v341
    %v346 = vmul.f32 %v142, %v342
    %v347 = vadd.f32 %v139, 2.0
    %v348 = vadd.f32 %v140, 2.0
    %v349 = vadd.f32 %v141, 2.0
    %v350 = vadd.f32 %v142, 2.0
    %v351 = vadd.f32 %v139, 3.0
    %v352 = vadd.f32 %v140, 3.0
    %v353 = vadd.f32 %v141, 3.0
    %v354 = vadd.f32 %v142, 3.0
    %v355 = vmul.f32 %v347, %v351
    %v356 = vmul.f32 %v348, %v352
    %v357 = vmul.f32 %v349, %v353
    %v358 = vmul.f32 %v350, %v354
    %v359 = vmul.f32 %v343, %v355
    %v360 = vmul.f32 %v344, %v356
    %v361 = vmul.f32 %v345, %v357
    %v362 = vmul.f32 %v346, %v358
    %v363 = vmul.f32 %v359, 9.536743e-07
    %v364 = vmul.f32 %v360, 9.536743e-07
    %v365 = vmul.f32 %v361, 9.536743e-07
    %v366 = vmul.f32 %v362, 9.536743e-07
    %v367 = vadd.f32 %v139, 4.0
    %v368 = vadd.f32 %v140, 4.0
    %v369 = vadd.f32 %v141, 4.0
    %v370 = vadd.f32 %v142, 4.0
    %v371 = vadd.f32 %v139, 5.0
    %v372 = vadd.f32 %v140, 5.0
    %v373 = vadd.f32 %v141, 5.0
    %v374 = vadd.f32 %v142, 5.0
    %v375 = vmul.f32 %v367, %v371
    %v376 = vmul.f32 %v368, %v372
    %v377 = vmul.f32 %v369, %v373
    %v378 = vmul.f32 %v370, %v374
    %v379 = vadd.f32 %v139, 6.0
    %v380 = vadd.f32 %v140, 6.0
    %v381 = vadd.f32 %v141, 6.0
    %v382 = vadd.f32 %v142, 6.0
    %v383 = vadd.f32 %v139, 7.0
    %v384 = vadd.f32 %v140, 7.0
    %v385 = vadd.f32 %v141, 7.0
    %v386 = vadd.f32 %v142, 7.0
    %v387 = vmul.f32 %v379, %v383
    %v388 = vmul.f32 %v380, %v384
    %v389 = vmul.f32 %v381, %v385
    %v390 = vmul.f32 %v382, %v386
    %v391 = vmul.f32 %v375, %v387
    %v392 = vmul.f32 %v376, %v388
    %v393 = vmul.f32 %v377, %v389
    %v394 = vmul.f32 %v378, %v390
    %v395 = vmul.f32 %v391, 9.536743e-07
    %v396 = vmul.f32 %v392, 9.536743e-07
    %v397 = vmul.f32 %v393, 9.536743e-07
    %v398 = vmul.f32 %v394, 9.536743e-07
    %v399 = vadd.f32 %v143, 1.0
    %v400 = vadd.f32 %v144, 1.0
    %v401 = vadd.f32 %v145, 1.0
    %v402 = vadd.f32 %v146, 1.0
    %v403 = vmul.f32 %v143, %v399
    %v404 = vmul.f32 %v144, %v400
    %v405 = vmul.f32 %v145, %v401
    %v406 = vmul.f32 %v146, %v402
    %v407 = vadd.f32 %v143, 2.0
    %v408 = vadd.f32 %v144, 2.0
    %v409 = vadd.f32 %v145, 2.0
    %v410 = vadd.f32 %v146, 2.0
    %v411 = vadd.f32 %v143, 3.0
    %v412 = vadd.f32 %v144, 3.0
    %v413 = vadd.f32 %v145, 3.0
    %v414 = vadd.f32 %v146, 3.0
    %v415 = vmul.f32 %v407, %v411
    %v416 = vmul.f32 %v408, %v412
    %v417 = vmul.f32 %v409, %v413
    %v418 = vmul.f32 %v410, %v414
    %v419 = vmul.f32 %v403, %v415
    %v420 = vmul.f32 %v404, %v416
    %v421 = vmul.f32 %v405, %v417
    %v422 = vmul.f32 %v406, %v418
    %v423 = vmul.f32 %v419, 9.536743e-07
    %v424 = vmul.f32 %v420, 9.536743e-07
    %v425 = vmul.f32 %v421, 9.536743e-07
    %v426 = vmul.f32 %v422, 9.536743e-07
    %v427 = vadd.f32 %v143, 4.0
    %v428 = vadd.f32 %v144, 4.0
    %v429 = vadd.f32 %v145, 4.0
    %v430 = vadd.f32 %v146, 4.0
    %v431 = vadd.f32 %v143, 5.0
    %v432 = vadd.f32 %v144, 5.0
    %v433 = vadd.f32 %v145, 5.0
    %v434 = vadd.f32 %v146, 5.0
    %v435 = vmul.f32 %v427, %v431
    %v436 = vmul.f32 %v428, %v432
    %v437 = vmul.f32 %v429, %v433
    %v438 = vmul.f32 %v430, %v434
    %v439 = vadd.f32 %v143, 6.0
    %v440 = vadd.f32 %v144, 6.0
    %v441 = vadd.f32 %v145, 6.0
    %v442 = vadd.f32 %v146, 6.0
    %v443 = vadd.f32 %v143, 7.0
    %v444 = vadd.f32 %v144, 7.0
    %v445 = vadd.f32 %v145, 7.0
    %v446 = vadd.f32 %v146, 7.0
    %v447 = vmul.f32 %v439, %v443
    %v448 = vmul.f32 %v440, %v444
    %v449 = vmul.f32 %v441, %v445
    %v450 = vmul.f32 %v442, %v446
    %v451 = vmul.f32 %v435, %v447
    %v452 = vmul.f32 %v436, %v448
    %v453 = vmul.f32 %v437, %v449
    %v454 = vmul.f32 %v438, %v450
    %v455 = vmul.f32 %v451, 9.536743e-07
    %v456 = vmul.f32 %v452, 9.536743e-07
    %v457 = vmul.f32 %v453, 9.536743e-07
    %v458 = vmul.f32 %v454, 9.536743e-07
    %v459 = vadd.f32 %v147, 1.0
    %v460 = vadd.f32 %v148, 1.0
    %v461 = vadd.f32 %v149, 1.0
    %v462 = vadd.f32 %v150, 1.0
    %v463 = vmul.f32 %v147, %v459
    %v464 = vmul.f32 %v148, %v460
    %v465 = vmul.f32 %v149, %v461
    %v466 = vmul.f32 %v150, %v462
    %v467 = vadd.f32 %v147, 2.0
    %v468 = vadd.f32 %v148, 2.0
    %v469 = vadd.f32 %v149, 2.0
    %v470 = vadd.f32 %v150, 2.0
    %v471 = vadd.f32 %v147, 3.0
    %v472 = vadd.f32 %v148, 3.0
    %v473 = vadd.f32 %v149, 3.0
    %v474 = vadd.f32 %v150, 3.0
    %v475 = vmul.f32 %v467, %v471
    %v476 = vmul.f32 %v468, %v472
    %v477 = vmul.f32 %v469, %v473
    %v478 = vmul.f32 %v470, %v474
    %v479 = vmul.f32 %v463, %v475
    %v480 = vmul.f32 %v464, %v476
    %v481 = vmul.f32 %v465, %v477
    %v482 = vmul.f32 %v466, %v478
    %v483 = vmul.f32 %v479, 9.536743e-07
    %v484 = vmul.f32 %v480, 9.536743e-07
    %v485 = vmul.f32 %v481, 9.536743e-07
    %v486 = vmul.f32 %v482, 9.536743e-07
    %v487 = vadd.f32 %v147, 4.0
    %v488 = vadd.f32 %v148, 4.0
    %v489 = vadd.f32 %v149, 4.0
    %v490 = vadd.f32 %v150, 4.0
    %v491 = vadd.f32 %v147, 5.0
    %v492 = vadd.f32 %v148, 5.0
    %v493 = vadd.f32 %v149, 5.0
    %v494 = vadd.f32 %v150, 5.0
    %v495 = vmul.f32 %v487, %v491
    %v496 = vmul.f32 %v488, %v492
    %v497 = vmul.f32 %v489, %v493
    %v498 = vmul.f32 %v490, %v494
    %v499 = vadd.f32 %v147, 6.0
    %v500 = vadd.f32 %v148, 6.0
    %v501 = vadd.f32 %v149, 6.0
    %v502 = vadd.f32 %v150, 6.0
    %v503 = vadd.f32 %v147, 7.0
    %v504 = vadd.f32 %v148, 7.0
    %v505 = vadd.f32 %v149, 7.0
    %v506 = vadd.f32 %v150, 7.0
    %v507 = vmul.f32 %v499, %v503
    %v508 = vmul.f32 %v500, %v504
    %v509 = vmul.f32 %v501, %v505
    %v510 = vmul.f32 %v502, %v506
    %v511 = vmul.f32 %v495, %v507
    %v512 = vmul.f32 %v496, %v508
    %v513 = vmul.f32 %v497, %v509
    %v514 = vmul.f32 %v498, %v510
    %v515 = vmul.f32 %v511, 9.536743e-07
    %v516 = vmul.f32 %v512, 9.536743e-07
    %v517 = vmul.f32 %v513, 9.536743e-07
    %v518 = vmul.f32 %v514, 9.536743e-07
    %v519 = vmul.f32 %v483, 9.536743e-07
    %v520 = vmul.f32 %v484, 9.536743e-07
    %v521 = vmul.f32 %v485, 9.536743e-07
    %v522 = vmul.f32 %v486, 9.536743e-07
    %v523 = vmul.f32 %v363, %v423
    %v524 = vmul.f32 %v364, %v424
    %v525 = vmul.f32 %v365, %v425
    %v526 = vmul.f32 %v366, %v426
    %v527 = vrcp.pop %v523
    %v528 = vmul.f32 %v519, %v527
    %v529 = vrcp.pop %v524
    %v530 = vmul.f32 %v520, %v529
    %v531 = vrcp.pop %v525
    %v532 = vmul.f32 %v521, %v531
    %v533 = vrcp.pop %v526
    %v534 = vmul.f32 %v522, %v533
    %v535 = vlog2.pop %v528
    %v536 = vmul.f32 %v535, 0.6931472
    %v537 = vlog2.pop %v530
    %v538 = vmul.f32 %v537, 0.6931472
    %v539 = vlog2.pop %v532
    %v540 = vmul.f32 %v539, 0.6931472
    %v541 = vlog2.pop %v534
    %v542 = vmul.f32 %v541, 0.6931472
    %v543 = vmul.f32 %v515, 9.536743e-07
    %v544 = vmul.f32 %v516, 9.536743e-07
    %v545 = vmul.f32 %v517, 9.536743e-07
    %v546 = vmul.f32 %v518, 9.536743e-07
    %v547 = vmul.f32 %v395, %v455
    %v548 = vmul.f32 %v396, %v456
    %v549 = vmul.f32 %v397, %v457
    %v550 = vmul.f32 %v398, %v458
    %v551 = vrcp.pop %v547
    %v552 = vmul.f32 %v543, %v551
    %v553 = vrcp.pop %v548
    %v554 = vmul.f32 %v544, %v553
    %v555 = vrcp.pop %v549
    %v556 = vmul.f32 %v545, %v555
    %v557 = vrcp.pop %v550
    %v558 = vmul.f32 %v546, %v557
    %v559 = vlog2.pop %v552
    %v560 = vmul.f32 %v559, 0.6931472
    %v561 = vlog2.pop %v554
    %v562 = vmul.f32 %v561, 0.6931472
    %v563 = vlog2.pop %v556
    %v564 = vmul.f32 %v563, 0.6931472
    %v565 = vlog2.pop %v558
    %v566 = vmul.f32 %v565, 0.6931472
    %v567 = vadd.f32 %v536, %v560
    %v568 = vadd.f32 %v538, %v562
    %v569 = vadd.f32 %v540, %v564
    %v570 = vadd.f32 %v542, %v566
    %v571 = vadd.f32 %v335, %v567
    %v572 = vadd.f32 %v336, %v568
    %v573 = vadd.f32 %v337, %v569
    %v574 = vadd.f32 %v338, %v570
    %v575 = vlog2.pop %v139
    %v576 = vmul.f32 %v575, 0.6931472
    %v577 = vlog2.pop %v140
    %v578 = vmul.f32 %v577, 0.6931472
    %v579 = vlog2.pop %v141
    %v580 = vmul.f32 %v579, 0.6931472
    %v581 = vlog2.pop %v142
    %v582 = vmul.f32 %v581, 0.6931472
    %v583 = vadd.f32 %v123, 1e-10
    %v584 = vadd.f32 %v124, 1e-10
    %v585 = vadd.f32 %v125, 1e-10
    %v586 = vadd.f32 %v126, 1e-10
    %v587 = vlog2.pop %v583
    %v588 = vmul.f32 %v587, 0.6931472
    %v589 = vlog2.pop %v584
    %v590 = vmul.f32 %v589, 0.6931472
    %v591 = vlog2.pop %v585
    %v592 = vmul.f32 %v591, 0.6931472
    %v593 = vlog2.pop %v586
    %v594 = vmul.f32 %v593, 0.6931472
    %v595 = vadd.f32 %v123, %v139
    %v596 = vadd.f32 %v124, %v140
    %v597 = vadd.f32 %v125, %v141
    %v598 = vadd.f32 %v126, %v142
    %v599 = vlog2.pop %v595
    %v600 = vmul.f32 %v599, 0.6931472
    %v601 = vlog2.pop %v596
    %v602 = vmul.f32 %v601, 0.6931472
    %v603 = vlog2.pop %v597
    %v604 = vmul.f32 %v603, 0.6931472
    %v605 = vlog2.pop %v598
    %v606 = vmul.f32 %v605, 0.6931472
    %v607 = vadd.f32 %v127, %v135
    %v608 = vadd.f32 %v128, %v136
    %v609 = vadd.f32 %v129, %v137
    %v610 = vadd.f32 %v130, %v138
    %v611 = vsub.f32 %v600, %v576
    %v612 = vsub.f32 %v602, %v578
    %v613 = vsub.f32 %v604, %v580
    %v614 = vsub.f32 %v606, %v582
    %v615 = vmul.f32 %v607, %v611
    %v616 = vmul.f32 %v608, %v612
    %v617 = vmul.f32 %v609, %v613
    %v618 = vmul.f32 %v610, %v614
    %v619 = vsub.f32 %v576, %v588
    %v620 = vsub.f32 %v578, %v590
    %v621 = vsub.f32 %v580, %v592
    %v622 = vsub.f32 %v582, %v594
    %v623 = vmul.f32 %v135, %v619
    %v624 = vmul.f32 %v136, %v620
    %v625 = vmul.f32 %v137, %v621
    %v626 = vmul.f32 %v138, %v622
    %v627 = vadd.f32 %v615, %v623
    %v628 = vadd.f32 %v616, %v624
    %v629 = vadd.f32 %v617, %v625
    %v630 = vadd.f32 %v618, %v626
    %v631 = vadd.f32 %v571, %v627
    %v632 = vadd.f32 %v572, %v628
    %v633 = vadd.f32 %v573, %v629
    %v634 = vadd.f32 %v574, %v630
    %v635 = vsub.f32 1.0, %v131
    %v636 = vsub.f32 1.0, %v132
    %v637 = vsub.f32 1.0, %v133
    %v638 = vsub.f32 1.0, %v134
    %v639 = vadd.f32 %v635, 1e-10
    %v640 = vadd.f32 %v636, 1e-10
    %v641 = vadd.f32 %v637, 1e-10
    %v642 = vadd.f32 %v638, 1e-10
    %v643 = vlog2.pop %v639
    %v644 = vmul.f32 %v643, 0.6931472
    %v645 = vlog2.pop %v640
    %v646 = vmul.f32 %v645, 0.6931472
    %v647 = vlog2.pop %v641
    %v648 = vmul.f32 %v647, 0.6931472
    %v649 = vlog2.pop %v642
    %v650 = vmul.f32 %v649, 0.6931472
    %v651 = vsub.f32 %v631, %v644
    %v652 = vsub.f32 %v632, %v646
    %v653 = vsub.f32 %v633, %v648
    %v654 = vsub.f32 %v634, %v650
    %v655 = vld [vmem:[#allocation10] sm:$0xff]
    %v656 = vld [vmem:[#allocation10 + $0x8] sm:$0xff]
    %v657 = vadd.f32 %v651, %v653
    %v658 = vadd.f32 %v652, %v654
    %v659 = vadd.f32 %v655, %v657
    %v660 = vadd.f32 %v656, %v658
    %661 = vst [vmem:[#allocation10] sm:$0xff] %v659
    %662 = vst [vmem:[#allocation10 + $0x8] sm:$0xff] %v660
    // Predicated region
    $region38: #{tpu_custom_call.1} parent=1 // pred_check
      _
    $region39: #{tpu_custom_call.1} parent=1 // pred_check_branch
      %664 = sbr.rel (0) target = $region41
    $region40: #{tpu_custom_call.1} parent=1 // pred_region
      %s666 = ssub.s32 256, 256
      %667 = vsyncadd [#allocation4], %s666
      %s669 = sshll.u32 [#allocation10], 4
      %s670 = int_to_ptr.vmem [resolvable:$true] %s669
      %672 = dma.vmem_to_hbm [thread:$0]  %s670, 256, %s4, [#allocation4]
    $region41: #{tpu_custom_call.1} parent=1 // pred_fallthru
      _
    // Predicated region
    $region42: #{tpu_custom_call.1} parent=1 // pred_check
      _
    $region43: #{tpu_custom_call.1} parent=1 // pred_check_branch
      %674 = sbr.rel (0) target = $region45
    $region44: #{tpu_custom_call.1} parent=1 // pred_region
      %675 = dma.done [#allocation4], 256
    $region45: #{tpu_custom_call.1} parent=1 // pred_fallthru
      _
    %676 = vsyncpa [#allocation3], 1
    %677 = vsyncpa [#allocation6], 1
    %678 = vsyncpa [#allocation9], 1
    %679 = vsyncpa [#allocation4], 1

</llo_original>
